<compile_context>
chip_gen: v7x
topology: tpu7x:2x2x1
jax: 0.10.0
libtpu: 0.0.40
codegen_flags: <defaults>
</compile_context>

<pallas_src>
import functools

import jax
import jax.numpy as jnp
from jax.experimental import pallas as pl
from jax.experimental.pallas import tpu as pltpu


def _ceil_to(x, m):
    return ((x + m - 1) // m) * m


# ----------------------------- Pallas kernel ------------------------------ #

def _gnn_edge_kernel(lo_ref, hi_ref, xt_ref, obj_ref, wattn_ref, bqr_ref,
                     wa_ref, ba_ref, alpha_ref, agg_ref, *,
                     node_block, mxu_dtype):
    i = pl.program_id(0)

    # agg_ref's index_map is constant across the (sequential, "arbitrary")
    # edge axis, so the output block is resident in VMEM: accumulate directly.
    @pl.when(i == 0)
    def _init():
        agg_ref[...] = jnp.zeros_like(agg_ref)

    xt = xt_ref[...]                              # [3D, TE] fused [hs;hr;hqr], edges on lanes
    in_dim = agg_ref.shape[0]
    te = xt.shape[1]

    # ---- fused attention: single MXU push, K = 3*in_dim ----
    s = jnp.dot(wattn_ref[...].astype(mxu_dtype), xt.astype(mxu_dtype),
                preferred_element_type=jnp.float32)          # [attn, TE]
    s = jnp.maximum(s + bqr_ref[...], 0.0)                   # ReLU, (attn,1) bias bcast

    # ---- alpha logits: VPU multiply + sublane reduce -> lane-dense [1, TE] ----
    logit = jnp.sum(s * wa_ref[...], axis=0, keepdims=True) + ba_ref[0, 0]
    alpha = jax.nn.sigmoid(logit)                            # [1, TE] f32
    alpha_ref[...] = alpha                                   # unmasked lane-dense store

    # ---- alpha folded into the message (one broadcast VPU mul per tile);
    #      the one-hot stays exactly {0,1} so bf16 MXU feeding is exact ----
    msg_t = ((xt[:in_dim, :] + xt[in_dim:2 * in_dim, :]) * alpha).astype(mxu_dtype)  # [D, TE]

    obj_row = obj_ref[...]                                   # [1, TE] int32
    n_nodes_pad = agg_ref.shape[1]
    n_blocks = n_nodes_pad // node_block
    lo = lo_ref[i]                                           # first node block this tile touches
    hi = hi_ref[i]                                           # last node block this tile touches

    # iota hoisted out of the node-block loop (JAX does not CSE broadcast_in_dim)
    rows = jax.lax.broadcasted_iota(jnp.int32, (node_block, te), 0)
    contract_last = (((1,), (1,)), ((), ()))                 # A @ B.T (contract lane axes)

    # Node-blocked scatter-sum, nodes on lanes: [D,TE] x [NB,TE]^T -> [D,NB].
    # Blocks outside the prefetched [lo, hi] range are skipped at runtime.
    # TODO(synk): for very large node counts (n_blocks >> 16) replace this
    #             static unroll with a lax.fori_loop(lo, hi+1) using a dynamic
    #             lane-offset accumulator slice.
    for nb in range(n_blocks):
        @pl.when(jnp.logical_and(lo <= nb, nb <= hi))
        def _scatter(nb=nb):
            base = nb * node_block
            # compare/select in f32 (v5e has no bf16 VALU), cast only the MXU operand
            onehot = jnp.where(rows == (obj_row - base), 1.0, 0.0)     # [NB, TE]
            agg_ref[:, base:base + node_block] += jax.lax.dot_general(
                msg_t, onehot.astype(mxu_dtype), contract_last,
                preferred_element_type=jnp.float32)                    # [D, NB]


def _vmem_limit_bytes(three_d, edge_tile, node_block, n_nodes_pad, in_dim, attn_dim):
    f32 = 4
    need = 0
    need += 2 * three_d * edge_tile * f32            # x_t tile, double-buffered
    need += 2 * edge_tile * 4                        # obj tile
    need += 2 * edge_tile * f32                      # alpha tile
    need += in_dim * n_nodes_pad * f32               # resident agg output block
    need += attn_dim * three_d * f32 + 2 * attn_dim * f32   # weights / bias columns
    need += 2 * node_block * edge_tile * f32         # one-hot temp (+ MXU-dtype copy)
    need += (attn_dim + in_dim) * edge_tile * f32    # s / msg temporaries
    limit = max(int(need * 1.5), 16 * 1024 * 1024)
    limit = min(limit, 48 * 1024 * 1024)             # stay inside v7x's 64 MiB physical VMEM
    return max(limit, need + (2 << 20))              # but never below the real footprint


def _gnn_message_passing(x_t, obj, w_attn_t, bqr_col, wa_col, ba, *,
                         n_nodes, edge_tile=1024, node_block=512,
                         mxu_dtype=jnp.bfloat16):
    three_d, e = x_t.shape
    in_dim = three_d // 3
    attn_dim = w_attn_t.shape[0]

    # pad node count to lane granularity (128) and to a multiple of node_block
    n_nodes_pad = max(_ceil_to(n_nodes, 128), 128)
    if node_block >= n_nodes_pad:
        node_block = n_nodes_pad
    else:
        node_block = _ceil_to(node_block, 128)
        n_nodes_pad = _ceil_to(n_nodes_pad, node_block)

    # pad edge axis; padded edges get zero features + out-of-range obj sentinel
    e_pad = _ceil_to(e, edge_tile)
    obj = obj.astype(jnp.int32)
    if e_pad != e:
        x_t = jnp.pad(x_t, ((0, 0), (0, e_pad - e)))
        obj = jnp.pad(obj, (0, e_pad - e), constant_values=n_nodes_pad)
    obj_row = obj.reshape(1, e_pad)

    num_tiles = e_pad // edge_tile
    # per-tile node-block range (valid whether or not edges were pre-sorted;
    # with obj-sorted edges it prunes the scatter loop to O(1) blocks per tile)
    obj_tiles = obj.reshape(num_tiles, edge_tile)
    lo_blk = (obj_tiles.min(axis=1) // node_block).astype(jnp.int32)
    hi_blk = (obj_tiles.max(axis=1) // node_block).astype(jnp.int32)

    kernel = functools.partial(_gnn_edge_kernel,
                               node_block=node_block, mxu_dtype=mxu_dtype)
    vmem_limit = _vmem_limit_bytes(three_d, edge_tile, node_block,
                                   n_nodes_pad, in_dim, attn_dim)

    alpha_row, agg_t = pl.pallas_call(
        kernel,
        out_shape=(jax.ShapeDtypeStruct((1, e_pad), jnp.float32),
                   jax.ShapeDtypeStruct((in_dim, n_nodes_pad), jnp.float32)),
        grid_spec=pltpu.PrefetchScalarGridSpec(
            num_scalar_prefetch=2,
            grid=(num_tiles,),
            in_specs=[
                pl.BlockSpec((three_d, edge_tile), lambda i, lo, hi: (0, i)),   # fused x^T
                pl.BlockSpec((1, edge_tile), lambda i, lo, hi: (0, i)),         # obj (lane-dense)
                pl.BlockSpec((attn_dim, three_d), lambda i, lo, hi: (0, 0)),    # stacked W_attn^T
                pl.BlockSpec((attn_dim, 1), lambda i, lo, hi: (0, 0)),          # b_qr column
                pl.BlockSpec((attn_dim, 1), lambda i, lo, hi: (0, 0)),          # w_alpha column
                pl.BlockSpec(memory_space=pltpu.MemorySpace.SMEM),              # b_alpha scalar
            ],
            out_specs=[
                pl.BlockSpec((1, edge_tile), lambda i, lo, hi: (0, i)),         # alpha
                pl.BlockSpec((in_dim, n_nodes_pad), lambda i, lo, hi: (0, 0)),  # agg (resident)
            ],
        ),
        compiler_params=pltpu.CompilerParams(
            dimension_semantics=("arbitrary",),   # edge axis carries the accumulator
            vmem_limit_bytes=vmem_limit,
        ),
    )(lo_blk, hi_blk, x_t, obj_row, w_attn_t, bqr_col, wa_col, ba)

    alpha = alpha_row[0, :e].reshape(e, 1)
    return alpha, agg_t[:, :n_nodes]              # agg transposed: [in_dim, n_nodes]


# ------------------------------ GNNLayer wrapper --------------------------- #

class GNNLayerPallas:
    """JAX/Pallas port of GNNLayer.forward (message-passing path)."""

    def __init__(self, in_dim, out_dim, attn_dim, n_user, n_item, n_rel,
                 n_node, K, act=lambda x: x, seed=0, ppr=None):
        self.n_user, self.n_item, self.n_rel = n_user, n_item, n_rel
        self.n_node, self.K, self.ppr = n_node, K, ppr
        self.in_dim, self.out_dim, self.attn_dim = in_dim, out_dim, attn_dim
        self.act = act

        key = jax.random.PRNGKey(seed)
        ks = jax.random.split(key, 8)
        n_emb = 2 * n_rel + 1 + 2
        scale = 0.1
        # nn.Linear(in, out) stores weight [out, in]; we keep the transpose
        # ([in, out]) so "x @ W" is the reference form.
        self.rela_embed = scale * jax.random.normal(ks[0], (n_emb, in_dim), jnp.float32)
        self.Ws_attn = scale * jax.random.normal(ks[1], (in_dim, attn_dim), jnp.float32)
        self.Wr_attn = scale * jax.random.normal(ks[2], (in_dim, attn_dim), jnp.float32)
        self.Wqr_attn = scale * jax.random.normal(ks[3], (in_dim, attn_dim), jnp.float32)
        self.b_qr = scale * jax.random.normal(ks[4], (1, attn_dim), jnp.float32)
        self.w_alpha = scale * jax.random.normal(ks[5], (attn_dim, 1), jnp.float32)
        self.b_alpha = scale * jax.random.normal(ks[6], (1, 1), jnp.float32)
        self.W_h = scale * jax.random.normal(ks[7], (in_dim, out_dim), jnp.float32)

        # kernel-layout parameters: one stacked attention weight for a single
        # K=3*in_dim matmul, biases / w_alpha as lane-broadcast columns, and a
        # pre-transposed relation table for column gathers ([D, n_emb]).
        self._w_attn_t = jnp.concatenate(
            [self.Ws_attn, self.Wr_attn, self.Wqr_attn], axis=0).T   # [attn, 3*in]
        self._b_qr_col = self.b_qr.T                                 # [attn, 1]
        self._rela_embed_t = self.rela_embed.T                       # [in, n_emb]

    def __call__(self, q_sub, q_rel, hidden, edges, nodes, id_layer, n_layer,
                 old_nodes_new_idx, edge_tile=1024, node_block=512,
                 mxu_dtype=jnp.bfloat16, sort_edges=True):
        # TODO(synk): the data-dependent graph-rewiring branches of the PyTorch
        # forward (torch.unique / torch.sort / variadic_topk ppr pruning, and the
        # last-layer item-tail filtering) produce dynamic shapes and have no clean
        # static-shape Pallas equivalent; `edges`/`nodes` are assumed preprocessed.
        sampled_nodes_idx = (nodes[:, 1] > -1) & (nodes[:, 1] < self.n_node + 1)
        t_nodes = nodes
        final_nodes = jnp.array([0], dtype=jnp.int32)

        sub = edges[:, 4]
        rel = edges[:, 2]
        obj = edges[:, 5].astype(jnp.int32)
        r_idx = edges[:, 0]
        e = edges.shape[0]

        # sort edges by obj BEFORE the gathers (zero extra HBM passes) so each
        # edge tile touches only a couple of node blocks inside the kernel.
        if sort_edges:
            perm = jnp.argsort(obj)
            sub, rel, r_idx, obj = sub[perm], rel[perm], r_idx[perm], obj[perm]

        # edge-on-lanes feature build: gather columns of pre-transposed tables
        # directly into [3D, E] (no [E, 3D] intermediate + full transpose).
        # TODO(synk): higher-effort option — scalar-prefetch sub/rel/r_idx and
        # gather per edge tile inside the kernel, eliminating x_t entirely.
        hidden_t = hidden.T                                        # [D, n_prev]
        hs_t = jnp.take(hidden_t, sub, axis=1)                     # [D, E]
        hr_t = jnp.take(self._rela_embed_t, rel, axis=1)           # [D, E]
        hqr_t = jnp.take(jnp.take(self._rela_embed_t, q_rel, axis=1), r_idx, axis=1)
        x_t = jnp.concatenate([hs_t, hr_t, hqr_t], axis=0)         # [3D, E]

        alpha_k, agg_t = _gnn_message_passing(
            x_t, obj, self._w_attn_t, self._b_qr_col, self.w_alpha, self.b_alpha,
            n_nodes=nodes.shape[0], edge_tile=edge_tile, node_block=node_block,
            mxu_dtype=mxu_dtype)

        if sort_edges:
            alpha = jnp.zeros((e, 1), jnp.float32).at[perm].set(alpha_k)
        else:
            alpha = alpha_k

        # final projection runs once outside the kernel; agg_t is [in_dim, n_nodes]
        # (nodes-on-lanes inside the kernel), one small transpose here.
        hidden_new = self.act(agg_t.T @ self.W_h)

        return (hidden_new, t_nodes, final_nodes, old_nodes_new_idx,
                sampled_nodes_idx, alpha, edges)


# ------------------------------ reference & demo --------------------------- #

def _reference(layer, q_rel, hidden, edges, n_nodes):
    sub, rel, obj, r_idx = edges[:, 4], edges[:, 2], edges[:, 5], edges[:, 0]
    hs = hidden[sub]
    hr = layer.rela_embed[rel]
    h_qr = layer.rela_embed[q_rel][r_idx]
    s = jnp.maximum(hs @ layer.Ws_attn + hr @ layer.Wr_attn
                    + h_qr @ layer.Wqr_attn + layer.b_qr, 0.0)
    alpha = jax.nn.sigmoid(s @ layer.w_alpha + layer.b_alpha)
    msg = alpha * (hs + hr)
    agg = jnp.zeros((n_nodes, layer.in_dim), jnp.float32).at[obj].add(msg)
    return alpha, agg @ layer.W_h


if __name__ == "__main__":
    in_dim, out_dim, attn_dim = 32, 32, 32
    n_user, n_item, n_rel, n_node, K = 10, 8, 5, 300, 4
    n_query, n_prev_nodes, n_new_nodes, n_edges = 4, 24, 200, 500  # exercises padding + 2 node blocks

    key = jax.random.PRNGKey(0)
    k1, k2, k3, k4, k5, k6, k7 = jax.random.split(key, 7)

    q_sub = jax.random.randint(k1, (n_query,), 0, n_user, dtype=jnp.int32)
    q_rel = jax.random.randint(k2, (n_query,), 0, n_rel, dtype=jnp.int32)
    hidden = jax.random.normal(k3, (n_prev_nodes, in_dim), jnp.float32)

    # edges: [r_idx, head_ent, rel, tail_ent, sub_idx(into hidden), obj_idx(into nodes)]
    r_idx = jax.random.randint(k4, (n_edges, 1), 0, n_query, dtype=jnp.int32)
    head = jax.random.randint(k4, (n_edges, 1), 0, n_node, dtype=jnp.int32)
    rel_c = jax.random.randint(k5, (n_edges, 1), 0, 2 * n_rel + 3, dtype=jnp.int32)
    tail = jax.random.randint(k5, (n_edges, 1), 0, n_node, dtype=jnp.int32)
    sub_i = jax.random.randint(k6, (n_edges, 1), 0, n_prev_nodes, dtype=jnp.int32)
    obj_i = jax.random.randint(k7, (n_edges, 1), 0, n_new_nodes, dtype=jnp.int32)
    edges = jnp.concatenate([r_idx, head, rel_c, tail, sub_i, obj_i], axis=1)

    nodes = jnp.concatenate(
        [jax.random.randint(k6, (n_new_nodes, 1), 0, n_query, dtype=jnp.int32),
         jax.random.randint(k7, (n_new_nodes, 1), 0, n_node, dtype=jnp.int32)],
        axis=1)
    old_nodes_new_idx = jnp.arange(8, dtype=jnp.int32)

    layer = GNNLayerPallas(in_dim, out_dim, attn_dim, n_user, n_item, n_rel,
                           n_node, K, act=lambda x: x, seed=0)

    alpha_ref, hidden_ref = _reference(layer, q_rel, hidden, edges, n_new_nodes)

    # --- f32 MXU path (tight correctness check), multi-tile grid + 2 node blocks ---
    out = layer(q_sub, q_rel, hidden, edges, nodes,
                id_layer=0, n_layer=3, old_nodes_new_idx=old_nodes_new_idx,
                edge_tile=256, node_block=128, mxu_dtype=jnp.float32)
    hidden_new, t_nodes, final_nodes, onni, samp_idx, alpha, edges_out = out
    jax.block_until_ready(hidden_new)
    jax.block_until_ready(alpha)
    assert alpha.shape == alpha_ref.shape and hidden_new.shape == hidden_ref.shape
    assert jnp.allclose(alpha, alpha_ref, atol=2e-5, rtol=2e-5)
    assert jnp.allclose(hidden_new, hidden_ref, atol=1e-4, rtol=1e-4)

    # --- default bf16 MXU path (looser tolerance) ---
    out_bf = layer(q_sub, q_rel, hidden, edges, nodes,
                   id_layer=0, n_layer=3, old_nodes_new_idx=old_nodes_new_idx)
    hidden_bf, _, _, _, _, alpha_bf, _ = out_bf
    jax.block_until_ready(hidden_bf)
    assert jnp.allclose(alpha_bf, alpha_ref, atol=2e-2, rtol=2e-2)
    assert jnp.allclose(hidden_bf, hidden_ref, atol=1e-1, rtol=1e-1)

    print("KERNEL_OK")
</pallas_src>

<mosaic_0001>
module attributes {stable_mosaic.version = 11 : i64} {
  func.func @_gnn_edge_kernel(%arg0: i32, %arg1: memref<2xi32, #tpu.memory_space<smem>>, %arg2: memref<2xi32, #tpu.memory_space<smem>>, %arg3: memref<96x256xf32, #tpu.memory_space<vmem>>, %arg4: memref<1x256xi32, #tpu.memory_space<vmem>>, %arg5: memref<32x96xf32, #tpu.memory_space<vmem>>, %arg6: memref<32x1xf32, #tpu.memory_space<vmem>>, %arg7: memref<32x1xf32, #tpu.memory_space<vmem>>, %arg8: memref<1x1xf32, #tpu.memory_space<smem>>, %arg9: memref<1x256xf32, #tpu.memory_space<vmem>>, %arg10: memref<32x256xf32, #tpu.memory_space<vmem>>) attributes {dimension_semantics = [#tpu.dimension_semantics<arbitrary>], iteration_bounds = array<i64: 2>, scalar_prefetch = 2 : i64, scratch_operands = 0 : i64, tpu.core_type = #tpu.core_type<tc>, window_params = [{transform_indices = @transform_0, window_bounds = array<i64: 96, 256>}, {transform_indices = @transform_1, window_bounds = array<i64: 1, 256>}, {pipeline_mode = #tpu.pipeline_mode<synchronous>, transform_indices = @transform_2, window_bounds = array<i64: 32, 96>}, {pipeline_mode = #tpu.pipeline_mode<synchronous>, transform_indices = @transform_3, window_bounds = array<i64: 32, 1>}, {pipeline_mode = #tpu.pipeline_mode<synchronous>, transform_indices = @transform_4, window_bounds = array<i64: 32, 1>}, {transform_indices = @transform_5, window_bounds = array<i64: 1, 1>}, {transform_indices = @transform_6, window_bounds = array<i64: 1, 256>}, {pipeline_mode = #tpu.pipeline_mode<synchronous>, transform_indices = @transform_7, window_bounds = array<i64: 32, 256>}]} {
    %c0_i32 = arith.constant 0 : i32
    %0 = arith.cmpi eq, %arg0, %c0_i32 : i32
    %1 = arith.extui %0 : i1 to i32
    %c0_i32_0 = arith.constant 0 : i32
    %2 = arith.cmpi ne, %1, %c0_i32_0 : i32
    scf.if %2 {
      %cst_22 = arith.constant 0.000000e+00 : f32
      %46 = vector.broadcast %cst_22 : f32 to vector<32x256xf32>
      %c0_23 = arith.constant 0 : index
      %c0_24 = arith.constant 0 : index
      %47 = vector.load %arg10[%c0_23, %c0_24] : memref<32x256xf32, #tpu.memory_space<vmem>>, vector<32x256xf32>
      tpu.vector_store %arg10[%c0_23, %c0_24], %46 {strides = array<i32>} : memref<32x256xf32, #tpu.memory_space<vmem>>, vector<32x256xf32>,
    } else {
    }
    %c0 = arith.constant 0 : index
    %c0_1 = arith.constant 0 : index
    %3 = vector.load %arg3[%c0, %c0_1] : memref<96x256xf32, #tpu.memory_space<vmem>>, vector<96x256xf32>
    %c0_2 = arith.constant 0 : index
    %c0_3 = arith.constant 0 : index
    %4 = vector.load %arg5[%c0_2, %c0_3] : memref<32x96xf32, #tpu.memory_space<vmem>>, vector<32x96xf32>
    %cst = arith.constant dense<0.000000e+00> : vector<32x256xf32>
    %5 = tpu.matmul %4, %3, %cst {dimension_numbers = #tpu.dot_dimension_numbers<[1], [0], [0], [1], [0, 0, 1, 1], [], []>} : vector<32x96xf32>, vector<96x256xf32>, vector<32x256xf32> -> vector<32x256xf32>
    %c0_4 = arith.constant 0 : index
    %c0_5 = arith.constant 0 : index
    %6 = vector.load %arg6[%c0_4, %c0_5] : memref<32x1xf32, #tpu.memory_space<vmem>>, vector<32x1xf32>
    %7 = vector.broadcast %6 : vector<32x1xf32> to vector<32x256xf32>
    %8 = arith.addf %5, %7 : vector<32x256xf32>
    %cst_6 = arith.constant 0.000000e+00 : f32
    %9 = vector.broadcast %cst_6 : f32 to vector<32x256xf32>
    %10 = arith.maximumf %8, %9 : vector<32x256xf32>
    %c0_7 = arith.constant 0 : index
    %c0_8 = arith.constant 0 : index
    %11 = vector.load %arg7[%c0_7, %c0_8] : memref<32x1xf32, #tpu.memory_space<vmem>>, vector<32x1xf32>
    %12 = vector.broadcast %11 : vector<32x1xf32> to vector<32x256xf32>
    %13 = arith.mulf %10, %12 : vector<32x256xf32>
    %cst_9 = arith.constant dense<0.000000e+00> : vector<256xf32>
    %14 = vector.multi_reduction <add>, %13, %cst_9 [0] : vector<32x256xf32> to vector<256xf32>
    %15 = vector.shape_cast %14 : vector<256xf32> to vector<1x256xf32>
    %c0_10 = arith.constant 0 : index
    %c0_11 = arith.constant 0 : index
    %16 = memref.load %arg8[%c0_10, %c0_11] : memref<1x1xf32, #tpu.memory_space<smem>>
    %17 = vector.broadcast %16 : f32 to vector<1x256xf32>
    %18 = arith.addf %15, %17 : vector<1x256xf32>
    %19 = arith.negf %18 : vector<1x256xf32>
    %20 = math.exp %19 : vector<1x256xf32>
    %cst_12 = arith.constant 1.000000e+00 : f32
    %21 = vector.broadcast %cst_12 : f32 to vector<1x256xf32>
    %22 = arith.addf %21, %20 : vector<1x256xf32>
    %23 = arith.divf %21, %22 : vector<1x256xf32>
    %c0_13 = arith.constant 0 : index
    %c0_14 = arith.constant 0 : index
    %24 = vector.load %arg9[%c0_13, %c0_14] : memref<1x256xf32, #tpu.memory_space<vmem>>, vector<1x256xf32>
    tpu.vector_store %arg9[%c0_13, %c0_14], %23 {strides = array<i32>} : memref<1x256xf32, #tpu.memory_space<vmem>>, vector<1x256xf32>,
    %25 = vector.extract_strided_slice %3 {offsets = [0, 0], sizes = [32, 256], strides = [1, 1]} : vector<96x256xf32> to vector<32x256xf32>
    %26 = vector.extract_strided_slice %3 {offsets = [32, 0], sizes = [32, 256], strides = [1, 1]} : vector<96x256xf32> to vector<32x256xf32>
    %27 = arith.addf %25, %26 : vector<32x256xf32>
    %28 = vector.broadcast %23 : vector<1x256xf32> to vector<32x256xf32>
    %29 = arith.mulf %27, %28 : vector<32x256xf32>
    %c0_15 = arith.constant 0 : index
    %c0_16 = arith.constant 0 : index
    %30 = vector.load %arg4[%c0_15, %c0_16] : memref<1x256xi32, #tpu.memory_space<vmem>>, vector<1x256xi32>
    %31 = arith.index_cast %arg0 : i32 to index
    %32 = memref.load %arg1[%31] : memref<2xi32, #tpu.memory_space<smem>>
    %33 = arith.index_cast %arg0 : i32 to index
    %34 = memref.load %arg2[%33] : memref<2xi32, #tpu.memory_space<smem>>
    %35 = tpu.iota {dimensions = array<i32: 0>} : vector<128x256xi32>
    %c0_i32_17 = arith.constant 0 : i32
    %36 = arith.cmpi sle, %32, %c0_i32_17 : i32
    %c0_i32_18 = arith.constant 0 : i32
    %37 = arith.cmpi sge, %34, %c0_i32_18 : i32
    %38 = arith.andi %36, %37 : i1
    %39 = arith.extui %38 : i1 to i32
    %c0_i32_19 = arith.constant 0 : i32
    %40 = arith.cmpi ne, %39, %c0_i32_19 : i32
    scf.if %40 {
      %c0_i32_22 = arith.constant 0 : i32
      %46 = vector.broadcast %c0_i32_22 : i32 to vector<1x256xi32>
      %47 = arith.subi %30, %46 : vector<1x256xi32>
      %48 = vector.broadcast %47 : vector<1x256xi32> to vector<128x256xi32>
      %49 = arith.cmpi eq, %35, %48 : vector<128x256xi32>
      %cst_23 = arith.constant 1.000000e+00 : f32
      %cst_24 = arith.constant 0.000000e+00 : f32
      %50 = vector.broadcast %cst_23 : f32 to vector<128x256xf32>
      %51 = vector.broadcast %cst_24 : f32 to vector<128x256xf32>
      %52 = arith.select %49, %50, %51 : vector<128x256xi1>, vector<128x256xf32>
      %c0_25 = arith.constant 0 : index
      %c0_26 = arith.constant 0 : index
      %53 = vector.load %arg10[%c0_25, %c0_26] : memref<32x256xf32, #tpu.memory_space<vmem>>, vector<32x128xf32>
      %cst_27 = arith.constant dense<0.000000e+00> : vector<32x128xf32>
      %54 = tpu.matmul %29, %52, %cst_27 {dimension_numbers = #tpu.dot_dimension_numbers<[1], [1], [0], [0], [0, 0, 1, 0], [], []>} : vector<32x256xf32>, vector<128x256xf32>, vector<32x128xf32> -> vector<32x128xf32>
      %55 = arith.addf %53, %54 : vector<32x128xf32>
      %c0_28 = arith.constant 0 : index
      %c0_29 = arith.constant 0 : index
      %56 = vector.load %arg10[%c0_28, %c0_29] : memref<32x256xf32, #tpu.memory_space<vmem>>, vector<32x128xf32>
      tpu.vector_store %arg10[%c0_28, %c0_29], %55 {strides = array<i32>} : memref<32x256xf32, #tpu.memory_space<vmem>>, vector<32x128xf32>,
    } else {
    }
    %c1_i32 = arith.constant 1 : i32
    %41 = arith.cmpi sle, %32, %c1_i32 : i32
    %c1_i32_20 = arith.constant 1 : i32
    %42 = arith.cmpi sge, %34, %c1_i32_20 : i32
    %43 = arith.andi %41, %42 : i1
    %44 = arith.extui %43 : i1 to i32
    %c0_i32_21 = arith.constant 0 : i32
    %45 = arith.cmpi ne, %44, %c0_i32_21 : i32
    scf.if %45 {
      %c128_i32 = arith.constant 128 : i32
      %46 = vector.broadcast %c128_i32 : i32 to vector<1x256xi32>
      %47 = arith.subi %30, %46 : vector<1x256xi32>
      %48 = vector.broadcast %47 : vector<1x256xi32> to vector<128x256xi32>
      %49 = arith.cmpi eq, %35, %48 : vector<128x256xi32>
      %cst_22 = arith.constant 1.000000e+00 : f32
      %cst_23 = arith.constant 0.000000e+00 : f32
      %50 = vector.broadcast %cst_22 : f32 to vector<128x256xf32>
      %51 = vector.broadcast %cst_23 : f32 to vector<128x256xf32>
      %52 = arith.select %49, %50, %51 : vector<128x256xi1>, vector<128x256xf32>
      %c0_24 = arith.constant 0 : index
      %c128 = arith.constant 128 : index
      %53 = vector.load %arg10[%c0_24, %c128] : memref<32x256xf32, #tpu.memory_space<vmem>>, vector<32x128xf32>
      %cst_25 = arith.constant dense<0.000000e+00> : vector<32x128xf32>
      %54 = tpu.matmul %29, %52, %cst_25 {dimension_numbers = #tpu.dot_dimension_numbers<[1], [1], [0], [0], [0, 0, 1, 0], [], []>} : vector<32x256xf32>, vector<128x256xf32>, vector<32x128xf32> -> vector<32x128xf32>
      %55 = arith.addf %53, %54 : vector<32x128xf32>
      %c0_26 = arith.constant 0 : index
      %c128_27 = arith.constant 128 : index
      %56 = vector.load %arg10[%c0_26, %c128_27] : memref<32x256xf32, #tpu.memory_space<vmem>>, vector<32x128xf32>
      tpu.vector_store %arg10[%c0_26, %c128_27], %55 {strides = array<i32>} : memref<32x256xf32, #tpu.memory_space<vmem>>, vector<32x128xf32>,
    } else {
    }
    return
  }
  func.func @transform_0(%arg0: i32, %arg1: memref<2xi32, #tpu.memory_space<smem>>, %arg2: memref<2xi32, #tpu.memory_space<smem>>) -> (i32, i32) {
    %c0_i32 = arith.constant 0 : i32
    %c0_i32_0 = arith.constant 0 : i32
    return %c0_i32, %arg0 : i32, i32
  }
  func.func @transform_1(%arg0: i32, %arg1: memref<2xi32, #tpu.memory_space<smem>>, %arg2: memref<2xi32, #tpu.memory_space<smem>>) -> (i32, i32) {
    %c0_i32 = arith.constant 0 : i32
    %c0_i32_0 = arith.constant 0 : i32
    return %c0_i32, %arg0 : i32, i32
  }
  func.func @transform_2(%arg0: i32, %arg1: memref<2xi32, #tpu.memory_space<smem>>, %arg2: memref<2xi32, #tpu.memory_space<smem>>) -> (i32, i32) {
    %c0_i32 = arith.constant 0 : i32
    %c0_i32_0 = arith.constant 0 : i32
    %c0_i32_1 = arith.constant 0 : i32
    return %c0_i32, %c0_i32_0 : i32, i32
  }
  func.func @transform_3(%arg0: i32, %arg1: memref<2xi32, #tpu.memory_space<smem>>, %arg2: memref<2xi32, #tpu.memory_space<smem>>) -> (i32, i32) {
    %c0_i32 = arith.constant 0 : i32
    %c0_i32_0 = arith.constant 0 : i32
    %c0_i32_1 = arith.constant 0 : i32
    return %c0_i32, %c0_i32_0 : i32, i32
  }
  func.func @transform_4(%arg0: i32, %arg1: memref<2xi32, #tpu.memory_space<smem>>, %arg2: memref<2xi32, #tpu.memory_space<smem>>) -> (i32, i32) {
    %c0_i32 = arith.constant 0 : i32
    %c0_i32_0 = arith.constant 0 : i32
    %c0_i32_1 = arith.constant 0 : i32
    return %c0_i32, %c0_i32_0 : i32, i32
  }
  func.func @transform_5(%arg0: i32, %arg1: memref<2xi32, #tpu.memory_space<smem>>, %arg2: memref<2xi32, #tpu.memory_space<smem>>) -> (i32, i32) {
    %c0_i32 = arith.constant 0 : i32
    %c0_i32_0 = arith.constant 0 : i32
    %c0_i32_1 = arith.constant 0 : i32
    return %c0_i32, %c0_i32_0 : i32, i32
  }
  func.func @transform_6(%arg0: i32, %arg1: memref<2xi32, #tpu.memory_space<smem>>, %arg2: memref<2xi32, #tpu.memory_space<smem>>) -> (i32, i32) {
    %c0_i32 = arith.constant 0 : i32
    %c0_i32_0 = arith.constant 0 : i32
    return %c0_i32, %arg0 : i32, i32
  }
  func.func @transform_7(%arg0: i32, %arg1: memref<2xi32, #tpu.memory_space<smem>>, %arg2: memref<2xi32, #tpu.memory_space<smem>>) -> (i32, i32) {
    %c0_i32 = arith.constant 0 : i32
    %c0_i32_0 = arith.constant 0 : i32
    %c0_i32_1 = arith.constant 0 : i32
    return %c0_i32, %c0_i32_0 : i32, i32
  }
}

</mosaic_0001>

<llo_original>
// kernel: tpu_custom_call.1
$region0: #{tpu_custom_call.1}
  #allocation0 [shape = 'u32[]', space=smem, size = 0x4, offset = 0x4, fixed_abs, tag = 'smem constant byte address 0x4 - core index']
  #allocation1 [shape = 'u32[144,128]{1,0:T(1,128)}', space=vmem, size = 0x12000, scoped, tag = 'internal scratch']
  #allocation2 [shape = 's32[1]{0}', space=sflag, size = 0x4, scoped, tag = 'scoped memory for tpu_custom_call.1']
  #allocation3 [shape = 'u8[512]{0}', space=smem, size = 0x200, scoped, tag = 'prefetched SMEM operand 0']
  #allocation4 [shape = 'u8[512]{0}', space=smem, size = 0x200, scoped, tag = 'prefetched SMEM operand 1']
  #allocation5 [shape = 'f32[1,1]{1,0:T(1,128)S(6)}', space=smem, size = 0x200, scoped, tag = 'scoped memory for tpu_custom_call.1']
  %s0 = inlined_call_operand.vmem [shape: s32[2], index: 0, kind: input, shape index: {}]
  %s1 = inlined_call_operand.vmem [shape: s32[2], index: 1, kind: input, shape index: {}]
  %s2 = inlined_call_operand.hbm [shape: f32[96,512], index: 2, kind: input, shape index: {}]
  %s3 = inlined_call_operand.vmem [shape: s32[1,512], index: 3, kind: input, shape index: {}]
  %s4 = inlined_call_operand.vmem [shape: f32[32,96], index: 4, kind: input, shape index: {}]
  %s5 = inlined_call_operand.vmem [shape: f32[32,1], index: 5, kind: input, shape index: {}]
  %s6 = inlined_call_operand.vmem [shape: f32[32,1], index: 6, kind: input, shape index: {}]
  %s7 = inlined_call_operand.<no memory space> [shape: f32[1,1], index: 7, kind: input, shape index: {}]
  %s8 = inlined_call_operand.hbm [shape: f32[1,512], index: 8, kind: output, shape index: {0}]
  %s9 = inlined_call_operand.hbm [shape: f32[32,256], index: 9, kind: output, shape index: {1}]
  %10 = xla_tuple %s8, %s9
  %s11 = sld [smem:[#allocation0]]
  $region81: #{tpu_custom_call.1} parent=0
    _
  %s13 = ssub.s32 1, %s11
  %s14 = scalar_select 0, %s13, %s11
  %s15 = sshll.u32 %s0, 4
  %s16 = int_to_ptr.vmem [resolvable:$true] %s15
  %18 = dma.vmem_to_smem %s16, 16, [#allocation3], [#allocation2]
  %s19 = sshll.u32 %s1, 4
  %s20 = int_to_ptr.vmem [resolvable:$true] %s19
  %22 = dma.vmem_to_smem %s20, 16, [#allocation4], [#allocation2]
  %23 = sst [smem:[#allocation5]] %s7
  %24 = dma.done [#allocation2], 32
  %25 = sfence
  $region1: #{tpu_custom_call.1} parent=0
    #allocation6 [shape = 'u8[196608]{0}', space=vmem, size = 0x30000, scoped, tag = 'input window, operand 2']
    #allocation7 [shape = 's32[2]{0}', space=sflag, size = 0x8, scoped, tag = 'scoped memory for tpu_custom_call.1']
    #allocation8 [shape = 's32[2]{0}', space=sflag, size = 0x8, scoped, tag = 'scoped memory for tpu_custom_call.1']
    #allocation9 [shape = 'u8[2048]{0}', space=vmem, size = 0x800, scoped, tag = 'output window, operand 0']
    #allocation10 [shape = 'u8[32768]{0}', space=vmem, size = 0x8000, scoped, tag = 'output window, operand 1, single buffered']
    #allocation11 [shape = 's32[1]{0}', space=sflag, size = 0x4, scoped, tag = 'scoped memory for tpu_custom_call.1']
    %26 = vsyncpa [#allocation7], 0
    %s27 = scalar_lea.sflag [#allocation7], 1
    %28 = vsyncpa %s27, 0
    %29 = vsyncpa [#allocation8], 0
    %s30 = scalar_lea.sflag [#allocation8], 1
    %31 = vsyncpa %s30, 0
    %32 = vsyncpa [#allocation11], 0
    loop: start=0, step=1, limit=4
    $region2: #{tpu_custom_call.1} parent=1 // loop_pre_header
      _
    $region3: #{tpu_custom_call.1} parent=1 // loop_header
      %s34 = sphi 0, %s38
      %p35 = scmp.ge.s32.totalorder %s34, 4
      %s44 = sphi 0, %s46
      %s47 = sphi 0, %s44
      %s48 = sphi 0, %s47
      %s64 = sphi 0, %s48
      %s70 = sphi 0, %s72
      %s73 = sphi 0, %s70
      %s74 = sphi 0, %s73
      %s90 = sphi 0, %s74
      %s94 = sphi 0, %s94
      %s96 = sphi 0, %s94
      %s97 = sphi 0, %s96
      %s111 = sphi 0, %s97
      %s115 = sphi 0, %s115
      %s117 = sphi 0, %s115
      %s118 = sphi 0, %s117
      %s132 = sphi 0, %s118
      %s136 = sphi 0, %s136
      %s138 = sphi 0, %s136
      %s139 = sphi 0, %s138
      %s153 = sphi 0, %s139
      %s157 = sphi 0, %s157
      %s159 = sphi 0, %s157
      %s160 = sphi 0, %s159
      %s174 = sphi 0, %s160
      %s180 = sphi 0, %s182
      %s183 = sphi 0, %s180
      %s184 = sphi 0, %s183
      %s200 = sphi 0, %s184
      %s204 = sphi 0, %s204
      %s206 = sphi 0, %s204
      %s207 = sphi 0, %s206
      %s221 = sphi 0, %s207
    $region4: #{tpu_custom_call.1} parent=1 // loop_header_branch
      %37 = sbr.rel (%p35) target = $region8
    $region5: #{tpu_custom_call.1} parent=1 // loop_body
      %s39 = ssub.s32 %s34, 1
      %s40 = ssub.s32 %s34, 2
      %s41 = sadd.s32 %s34, 1
      %s42 = ssub.s32 %s34, %s41
      %p43 = scmp.eq.s32.totalorder %s42, 0
      %s45 = sadd.s32 %s44, 1
      %s46 = scalar_select %p43, %s44, %s45
      %p49 = pneg %p43
      %p50 = scmp.eq.s32.totalorder %s34, 1
      %p51 = por %p49, %p50
      %p52 = scmp.ne.s32.totalorder %s44, %s47
      %p53 = scmp.eq.s32.totalorder %s34, 0
      %p54 = por %p52, %p53
      %p55 = scmp.ne.s32.totalorder %s44, %s47
      %p56 = scmp.eq.s32.totalorder %s39, 1
      %p57 = por %p55, %p56
      %p58 = scmp.ne.s32.totalorder %s47, %s48
      %p59 = scmp.eq.s32.totalorder %s39, 0
      %p60 = por %p58, %p59
      %p61 = scmp.ne.s32.totalorder %s47, %s48
      %p62 = scmp.eq.s32.totalorder %s40, 1
      %p63 = por %p61, %p62
      %p65 = scmp.ne.s32.totalorder %s48, %s64
      %p66 = scmp.eq.s32.totalorder %s40, 0
      %p67 = por %p65, %p66
      %s68 = ssub.s32 %s34, %s41
      %p69 = scmp.eq.s32.totalorder %s68, 0
      %s71 = sadd.s32 %s70, 1
      %s72 = scalar_select %p69, %s70, %s71
      %p75 = pneg %p69
      %p76 = scmp.eq.s32.totalorder %s34, 1
      %p77 = por %p75, %p76
      %p78 = scmp.ne.s32.totalorder %s70, %s73
      %p79 = scmp.eq.s32.totalorder %s34, 0
      %p80 = por %p78, %p79
      %p81 = scmp.ne.s32.totalorder %s70, %s73
      %p82 = scmp.eq.s32.totalorder %s39, 1
      %p83 = por %p81, %p82
      %p84 = scmp.ne.s32.totalorder %s73, %s74
      %p85 = scmp.eq.s32.totalorder %s39, 0
      %p86 = por %p84, %p85
      %p87 = scmp.ne.s32.totalorder %s73, %s74
      %p88 = scmp.eq.s32.totalorder %s40, 1
      %p89 = por %p87, %p88
      %p91 = scmp.ne.s32.totalorder %s74, %s90
      %p92 = scmp.eq.s32.totalorder %s40, 0
      %p93 = por %p91, %p92
      %s95 = sadd.s32 %s94, 1
      %p98 = scmp.eq.s32.totalorder %s34, 1
      %p99 = scmp.ne.s32.totalorder %s94, %s96
      %p100 = scmp.eq.s32.totalorder %s34, 0
      %p101 = por %p99, %p100
      %p102 = scmp.ne.s32.totalorder %s94, %s96
      %p103 = scmp.eq.s32.totalorder %s39, 1
      %p104 = por %p102, %p103
      %p105 = scmp.ne.s32.totalorder %s96, %s97
      %p106 = scmp.eq.s32.totalorder %s39, 0
      %p107 = por %p105, %p106
      %p108 = scmp.ne.s32.totalorder %s96, %s97
      %p109 = scmp.eq.s32.totalorder %s40, 1
      %p110 = por %p108, %p109
      %p112 = scmp.ne.s32.totalorder %s97, %s111
      %p113 = scmp.eq.s32.totalorder %s40, 0
      %p114 = por %p112, %p113
      %s116 = sadd.s32 %s115, 1
      %p119 = scmp.eq.s32.totalorder %s34, 1
      %p120 = scmp.ne.s32.totalorder %s115, %s117
      %p121 = scmp.eq.s32.totalorder %s34, 0
      %p122 = por %p120, %p121
      %p123 = scmp.ne.s32.totalorder %s115, %s117
      %p124 = scmp.eq.s32.totalorder %s39, 1
      %p125 = por %p123, %p124
      %p126 = scmp.ne.s32.totalorder %s117, %s118
      %p127 = scmp.eq.s32.totalorder %s39, 0
      %p128 = por %p126, %p127
      %p129 = scmp.ne.s32.totalorder %s117, %s118
      %p130 = scmp.eq.s32.totalorder %s40, 1
      %p131 = por %p129, %p130
      %p133 = scmp.ne.s32.totalorder %s118, %s132
      %p134 = scmp.eq.s32.totalorder %s40, 0
      %p135 = por %p133, %p134
      %s137 = sadd.s32 %s136, 1
      %p140 = scmp.eq.s32.totalorder %s34, 1
      %p141 = scmp.ne.s32.totalorder %s136, %s138
      %p142 = scmp.eq.s32.totalorder %s34, 0
      %p143 = por %p141, %p142
      %p144 = scmp.ne.s32.totalorder %s136, %s138
      %p145 = scmp.eq.s32.totalorder %s39, 1
      %p146 = por %p144, %p145
      %p147 = scmp.ne.s32.totalorder %s138, %s139
      %p148 = scmp.eq.s32.totalorder %s39, 0
      %p149 = por %p147, %p148
      %p150 = scmp.ne.s32.totalorder %s138, %s139
      %p151 = scmp.eq.s32.totalorder %s40, 1
      %p152 = por %p150, %p151
      %p154 = scmp.ne.s32.totalorder %s139, %s153
      %p155 = scmp.eq.s32.totalorder %s40, 0
      %p156 = por %p154, %p155
      %s158 = sadd.s32 %s157, 1
      %p161 = scmp.eq.s32.totalorder %s34, 1
      %p162 = scmp.ne.s32.totalorder %s157, %s159
      %p163 = scmp.eq.s32.totalorder %s34, 0
      %p164 = por %p162, %p163
      %p165 = scmp.ne.s32.totalorder %s157, %s159
      %p166 = scmp.eq.s32.totalorder %s39, 1
      %p167 = por %p165, %p166
      %p168 = scmp.ne.s32.totalorder %s159, %s160
      %p169 = scmp.eq.s32.totalorder %s39, 0
      %p170 = por %p168, %p169
      %p171 = scmp.ne.s32.totalorder %s159, %s160
      %p172 = scmp.eq.s32.totalorder %s40, 1
      %p173 = por %p171, %p172
      %p175 = scmp.ne.s32.totalorder %s160, %s174
      %p176 = scmp.eq.s32.totalorder %s40, 0
      %p177 = por %p175, %p176
      %s178 = ssub.s32 %s34, %s41
      %p179 = scmp.eq.s32.totalorder %s178, 0
      %s181 = sadd.s32 %s180, 1
      %s182 = scalar_select %p179, %s180, %s181
      %p185 = pneg %p179
      %p186 = scmp.eq.s32.totalorder %s34, 1
      %p187 = por %p185, %p186
      %p188 = scmp.ne.s32.totalorder %s180, %s183
      %p189 = scmp.eq.s32.totalorder %s34, 0
      %p190 = por %p188, %p189
      %p191 = scmp.ne.s32.totalorder %s180, %s183
      %p192 = scmp.eq.s32.totalorder %s39, 1
      %p193 = por %p191, %p192
      %p194 = scmp.ne.s32.totalorder %s183, %s184
      %p195 = scmp.eq.s32.totalorder %s39, 0
      %p196 = por %p194, %p195
      %p197 = scmp.ne.s32.totalorder %s183, %s184
      %p198 = scmp.eq.s32.totalorder %s40, 1
      %p199 = por %p197, %p198
      %p201 = scmp.ne.s32.totalorder %s184, %s200
      %p202 = scmp.eq.s32.totalorder %s40, 0
      %p203 = por %p201, %p202
      %s205 = sadd.s32 %s204, 1
      %p208 = scmp.eq.s32.totalorder %s34, 1
      %p209 = scmp.ne.s32.totalorder %s204, %s206
      %p210 = scmp.eq.s32.totalorder %s34, 0
      %p211 = por %p209, %p210
      %p212 = scmp.ne.s32.totalorder %s204, %s206
      %p213 = scmp.eq.s32.totalorder %s39, 1
      %p214 = por %p212, %p213
      %p215 = scmp.ne.s32.totalorder %s206, %s207
      %p216 = scmp.eq.s32.totalorder %s39, 0
      %p217 = por %p215, %p216
      %p218 = scmp.ne.s32.totalorder %s206, %s207
      %p219 = scmp.eq.s32.totalorder %s40, 1
      %p220 = por %p218, %p219
      %p222 = scmp.ne.s32.totalorder %s207, %s221
      %p223 = scmp.eq.s32.totalorder %s40, 0
      %p224 = por %p222, %p223
      %p225 = scmp.le.s32.totalorder 1, %s34
      %p226 = scmp.lt.s32.totalorder %s34, 3
      %p227 = pnand %p225, %p226
      %p228 = pneg %p227
      // Predicated region
      $region9: #{tpu_custom_call.1} parent=5 // pred_check
        _
      $region10: #{tpu_custom_call.1} parent=5 // pred_check_branch
        %230 = sbr.rel (%p227) target = $region12
      $region11: #{tpu_custom_call.1} parent=5 // pred_region
        %s231 = ssub.s32 %s34, 1
        // Predicated region
        $region13: #{tpu_custom_call.1} parent=11 // pred_check
          %p232 = pneg %p107
        $region14: #{tpu_custom_call.1} parent=11 // pred_check_branch
          %234 = sbr.rel (%p232) target = $region16
        $region15: #{tpu_custom_call.1} parent=11 // pred_region
          _
        $region16: #{tpu_custom_call.1} parent=11 // pred_fallthru
          _
        // Predicated region
        $region17: #{tpu_custom_call.1} parent=11 // pred_check
          %p235 = pneg %p128
        $region18: #{tpu_custom_call.1} parent=11 // pred_check_branch
          %237 = sbr.rel (%p235) target = $region20
        $region19: #{tpu_custom_call.1} parent=11 // pred_region
          _
        $region20: #{tpu_custom_call.1} parent=11 // pred_fallthru
          _
        // Predicated region
        $region21: #{tpu_custom_call.1} parent=11 // pred_check
          %p238 = pneg %p149
        $region22: #{tpu_custom_call.1} parent=11 // pred_check_branch
          %240 = sbr.rel (%p238) target = $region24
        $region23: #{tpu_custom_call.1} parent=11 // pred_region
          _
        $region24: #{tpu_custom_call.1} parent=11 // pred_fallthru
          _
        // Predicated region
        $region25: #{tpu_custom_call.1} parent=11 // pred_check
          %p241 = pneg %p170
        $region26: #{tpu_custom_call.1} parent=11 // pred_check_branch
          %243 = sbr.rel (%p241) target = $region28
        $region27: #{tpu_custom_call.1} parent=11 // pred_region
          _
        $region28: #{tpu_custom_call.1} parent=11 // pred_fallthru
          _
      $region12: #{tpu_custom_call.1} parent=5 // pred_fallthru
        _
      %p244 = scmp.lt.s32.totalorder %s34, 2
      // Predicated region
      $region29: #{tpu_custom_call.1} parent=5 // pred_check
        %p245 = pneg %p244
      $region30: #{tpu_custom_call.1} parent=5 // pred_check_branch
        %247 = sbr.rel (%p245) target = $region32
      $region31: #{tpu_custom_call.1} parent=5 // pred_region
        // Predicated region
        $region33: #{tpu_custom_call.1} parent=31 // pred_check
          %p248 = pneg %p54
        $region34: #{tpu_custom_call.1} parent=31 // pred_check_branch
          %250 = sbr.rel (%p248) target = $region36
        $region35: #{tpu_custom_call.1} parent=31 // pred_region
          %s251 = sand.u32 %s44, 1
          %s252 = scalar_lea.sflag [#allocation7], %s251
          %s253 = sand.u32 %s44, 1
          %s254 = smul.addr %s253, 192
          %s255 = scalar_lea.vmem [#allocation6], %s254
          %s256 = smul.u32 2, %s34
          %s258 = ssub.s32 3072, 3072
          %259 = vsyncadd %s252, %s258
          %s260 = smul.addr %s256, 128
          %s261 = scalar_lea.hbm %s2, %s260
          %s262 = sshll.u32 %s255, 4
          %s263 = int_to_ptr.vmem [resolvable:$true] %s262
          %268 = dma.hbm_to_vmem [thread:$0]  %s261, 3072, %s263, %s252, 512, 256, 16
        $region36: #{tpu_custom_call.1} parent=31 // pred_fallthru
          _
        // Predicated region
        $region37: #{tpu_custom_call.1} parent=31 // pred_check
          %p269 = pneg %p80
        $region38: #{tpu_custom_call.1} parent=31 // pred_check_branch
          %271 = sbr.rel (%p269) target = $region40
        $region39: #{tpu_custom_call.1} parent=31 // pred_region
          %s272 = smul.u32 2, %s34
          %p273 = scmp.lt.s32.totalorder %s272, 3
          %s274 = scalar_select %p273, %s272, 3
          %s275 = scalar_lea.vmem %s3, %s274
          %s276 = smul.u32 2, %s34
        $region40: #{tpu_custom_call.1} parent=31 // pred_fallthru
          _
      $region32: #{tpu_custom_call.1} parent=5 // pred_fallthru
        _
      %p277 = scmp.le.s32.totalorder 1, %s34
      %p278 = scmp.lt.s32.totalorder %s34, 3
      %p279 = pnand %p277, %p278
      %p280 = pneg %p279
      // Predicated region
      $region41: #{tpu_custom_call.1} parent=5 // pred_check
        _
      $region42: #{tpu_custom_call.1} parent=5 // pred_check_branch
        %282 = sbr.rel (%p279) target = $region44
      $region43: #{tpu_custom_call.1} parent=5 // pred_region
        %s283 = ssub.s32 %s34, 1
        %s284 = sand.u32 %s47, 1
        %s285 = scalar_lea.sflag [#allocation7], %s284
        %s286 = sand.u32 %s47, 1
        %s287 = smul.addr %s286, 192
        %s288 = scalar_lea.vmem [#allocation6], %s287
        // Predicated region
        $region45: #{tpu_custom_call.1} parent=43 // pred_check
          %p289 = pneg %p60
        $region46: #{tpu_custom_call.1} parent=43 // pred_check_branch
          %291 = sbr.rel (%p289) target = $region48
        $region47: #{tpu_custom_call.1} parent=43 // pred_region
          %292 = dma.done %s285, 3072
        $region48: #{tpu_custom_call.1} parent=43 // pred_fallthru
          _
        %s293 = sand.u32 %s47, 1
        %s294 = scalar_lea.sflag [#allocation7], %s293
        %s295 = sand.u32 %s47, 1
        %s296 = smul.addr %s295, 192
        %s297 = scalar_lea.vmem [#allocation6], %s296
        %p298 = pneg %p60
        %p299 = pneg %p57
        %s300 = smul.u32 2, %s39
        %p301 = scmp.lt.s32.totalorder %s300, 3
        %s302 = scalar_select %p301, %s300, 3
        %s303 = scalar_lea.vmem %s3, %s302
        %p304 = pneg %p86
        %p305 = pneg %p83
        %p306 = pneg %p107
        %p307 = pneg %p104
        %p308 = pneg %p128
        %p309 = pneg %p125
        %p310 = pneg %p149
        %p311 = pneg %p146
        %p312 = pneg %p170
        %p313 = pneg %p167
        %p314 = pneg %p196
        %p315 = pneg %p193
        %s316 = sand.u32 %s183, 1
        %s317 = scalar_lea.sflag [#allocation8], %s316
        %s318 = sand.u32 %s183, 1
        %s319 = smul.addr %s318, 2
        %s320 = scalar_lea.vmem [#allocation9], %s319
        %p321 = pneg %p217
        %p322 = pneg %p214
        %s323 = smul.u32 2, %s39
        %s324 = smul.u32 2, %s39
        %p325 = scmp.lt.s32.totalorder %s324, 3
        %s326 = scalar_select %p325, %s324, 3
        %s327 = scalar_lea.vmem %s3, %s326
        %s328 = smul.u32 2, %s39
        %s329 = smul.u32 2, %s39
        %p330 = scmp.eq.s32.totalorder %s39, 0
        // Predicated region
        $region49: #{tpu_custom_call.1} parent=43 // pred_check
          %p331 = pneg %p330
        $region50: #{tpu_custom_call.1} parent=43 // pred_check_branch
          %333 = sbr.rel (%p331) target = $region52
        $region51: #{tpu_custom_call.1} parent=43 // pred_region
          %334 = vst [vmem:[#allocation10] sm:$0xff] 0.0
          %335 = vst [vmem:[#allocation10 + $0x8] sm:$0xff] 0.0
          %336 = vst [vmem:[#allocation10 + $0x10] sm:$0xff] 0.0
          %337 = vst [vmem:[#allocation10 + $0x18] sm:$0xff] 0.0
          %338 = vst [vmem:[#allocation10 + $0x20] sm:$0xff] 0.0
          %339 = vst [vmem:[#allocation10 + $0x28] sm:$0xff] 0.0
          %340 = vst [vmem:[#allocation10 + $0x30] sm:$0xff] 0.0
          %341 = vst [vmem:[#allocation10 + $0x38] sm:$0xff] 0.0
        $region52: #{tpu_custom_call.1} parent=43 // pred_fallthru
          _
        %v342 = vld [vmem:[%s288] sm:$0xff]
        %v343 = vld [vmem:[%s288 + $0x8] sm:$0xff]
        %v344 = vld [vmem:[%s288 + $0x10] sm:$0xff]
        %v345 = vld [vmem:[%s288 + $0x18] sm:$0xff]
        %v346 = vld [vmem:[%s288 + $0x20] sm:$0xff]
        %v347 = vld [vmem:[%s288 + $0x28] sm:$0xff]
        %v348 = vld [vmem:[%s288 + $0x30] sm:$0xff]
        %v349 = vld [vmem:[%s288 + $0x38] sm:$0xff]
        %v350 = vld [vmem:[%s288 + $0x40] sm:$0xff]
        %v351 = vld [vmem:[%s288 + $0x48] sm:$0xff]
        %v352 = vld [vmem:[%s288 + $0x50] sm:$0xff]
        %v353 = vld [vmem:[%s288 + $0x58] sm:$0xff]
        %v354 = vld [vmem:[%s288 + $0x60] sm:$0xff]
        %v355 = vld [vmem:[%s288 + $0x68] sm:$0xff]
        %v356 = vld [vmem:[%s288 + $0x70] sm:$0xff]
        %v357 = vld [vmem:[%s288 + $0x78] sm:$0xff]
        %v358 = vld [vmem:[%s288 + $0x80] sm:$0xff]
        %v359 = vld [vmem:[%s288 + $0x88] sm:$0xff]
        %v360 = vld [vmem:[%s288 + $0x90] sm:$0xff]
        %v361 = vld [vmem:[%s288 + $0x98] sm:$0xff]
        %v362 = vld [vmem:[%s288 + $0xa0] sm:$0xff]
        %v363 = vld [vmem:[%s288 + $0xa8] sm:$0xff]
        %v364 = vld [vmem:[%s288 + $0xb0] sm:$0xff]
        %v365 = vld [vmem:[%s288 + $0xb8] sm:$0xff]
        %v366 = vld [vmem:[%s4] sm:$0xff]
        %v367 = vld [vmem:[%s4 + $0x8] sm:$0xff]
        %v368 = vld [vmem:[%s4 + $0x10] sm:$0xff]
        %v369 = vld [vmem:[%s4 + $0x18] sm:$0xff]
        %v370 = vld [vmem:[%s5] sm:$0xff]
        %v371 = vld [vmem:[%s5 + $0x8] sm:$0xff]
        %v372 = vld [vmem:[%s5 + $0x10] sm:$0xff]
        %v373 = vld [vmem:[%s5 + $0x18] sm:$0xff]
        %375 = vset.pattern.permute.xlu0 0
        %376 = vperm.xlu0 %375, %v370
        %v377 = vpop.permute.xlu0 %376
        %380 = vset.pattern.permute.xlu0 0
        %381 = vperm.xlu0 %380, %v371
        %v382 = vpop.permute.xlu0 %381
        %385 = vset.pattern.permute.xlu0 0
        %386 = vperm.xlu0 %385, %v372
        %v387 = vpop.permute.xlu0 %386
        %390 = vset.pattern.permute.xlu0 0
        %391 = vperm.xlu0 %390, %v373
        %v392 = vpop.permute.xlu0 %391
        %vm394 = vcmask 785408
        %v396 = vsel %vm394, %v366, 0
        %v399 = vsel %vm394, %v367, 0
        %v402 = vsel %vm394, %v368, 0
        %v405 = vsel %vm394, %v369, 0
        %407 = vmatprep.subr.mxu0 %v343
        %408 = vmatpush1.msra.mxu0 %v342
        %409 = vmatprep.subr.mxu0 %v345
        %410 = vmatpush1.msra.mxu0 %v344
        %411 = vmatprep.subr.mxu0 %v347
        %412 = vmatpush1.msra.mxu0 %v346
        %413 = vmatprep.subr.mxu0 %v349
        %414 = vmatpush1.msra.mxu0 %v348
        %415 = vmatprep.subr.mxu0 %v351
        %416 = vmatpush1.msra.mxu0 %v350
        %417 = vmatprep.subr.mxu0 %v353
        %418 = vmatpush1.msra.mxu0 %v352
        %419 = vmatprep.subr.mxu0 %v355
        %420 = vmatpush1.msra.mxu0 %v354
        %421 = vmatprep.subr.mxu0 %v357
        %422 = vmatpush1.msra.mxu0 %v356
        %423 = vmatprep.subr.mxu0 %v359
        %424 = vmatpush1.msra.mxu0 %v358
        %425 = vmatprep.subr.mxu0 %v361
        %426 = vmatpush1.msra.mxu0 %v360
        %427 = vmatprep.subr.mxu0 %v363
        %428 = vmatpush1.msra.mxu0 %v362
        %429 = vmatprep.subr.mxu0 %v365
        %430 = vmatpush1.msra.mxu0 %v364
        %431 = vmatprep.subr.mxu0 0.0
        %432 = vmatpush1.msra.mxu0 0.0
        %433 = vmatprep.subr.mxu0 0.0
        %434 = vmatpush1.msra.mxu0 0.0
        %435 = vmatprep.subr.mxu0 0.0
        %436 = vmatpush1.msra.mxu0 0.0
        %437 = vmatprep.subr.mxu0 0.0
        %438 = vmatpush1.msra.mxu0 0.0
        %439 = vmatprep.subr.mxu0 0.0
        %440 = vmatpush1.msra.mxu0 0.0
        %441 = vmatprep.subr.mxu0 0.0
        %442 = vmatpush1.msra.mxu0 0.0
        %443 = vmatprep.subr.mxu0 0.0
        %444 = vmatpush1.msra.mxu0 0.0
        %445 = vmatprep.subr.mxu0 0.0
        %446 = vmatpush1.msra.mxu0 0.0
        %447 = vmatprep.subr.mxu0 0.0
        %448 = vmatpush1.msra.mxu0 0.0
        %449 = vmatprep.subr.mxu0 0.0
        %450 = vmatpush1.msra.mxu0 0.0
        %451 = vmatprep.subr.mxu0 0.0
        %452 = vmatpush1.msra.mxu0 0.0
        %453 = vmatprep.subr.mxu0 0.0
        %454 = vmatpush1.msra.mxu0 0.0
        %455 = vmatprep.subr.mxu0 0.0
        %456 = vmatpush1.msra.mxu0 0.0
        %457 = vmatprep.subr.mxu0 0.0
        %458 = vmatpush1.msra.mxu0 0.0
        %459 = vmatprep.subr.mxu0 0.0
        %460 = vmatpush1.msra.mxu0 0.0
        %461 = vmatprep.subr.mxu0 0.0
        %462 = vmatpush1.msra.mxu0 0.0
        %463 = vmatprep.subr.mxu0 0.0
        %464 = vmatpush1.msra.mxu0 0.0
        %465 = vmatprep.subr.mxu0 0.0
        %466 = vmatpush1.msra.mxu0 0.0
        %467 = vmatprep.subr.mxu0 0.0
        %468 = vmatpush1.msra.mxu0 0.0
        %469 = vmatprep.subr.mxu0 0.0
        %470 = vmatpush1.msra.mxu0 0.0
        %471 = vmatprep.mubr.f32.mxu0 0.0
        %472 = vmatmul.mubr.f32.gmra.mrb[0].mxu0 %v396
        %v473 = vpop.f32.mrb[0].mxu0
        %v474 = vadd.f32 %v377, %v473
        %v475 = vpop.f32.mrb[0].mxu0
        %v476 = vadd.f32 %v377, %v475
        %477 = vmatprep.mubr.f32.mxu0 0.0
        %478 = vmatmul.mubr.f32.gmra.mrb[0].mxu0 %v399
        %v479 = vpop.f32.mrb[0].mxu0
        %v480 = vadd.f32 %v382, %v479
        %v481 = vpop.f32.mrb[0].mxu0
        %v482 = vadd.f32 %v382, %v481
        %483 = vmatprep.mubr.f32.mxu0 0.0
        %484 = vmatmul.mubr.f32.gmra.mrb[0].mxu0 %v402
        %v485 = vpop.f32.mrb[0].mxu0
        %v486 = vadd.f32 %v387, %v485
        %v487 = vpop.f32.mrb[0].mxu0
        %v488 = vadd.f32 %v387, %v487
        %489 = vmatprep.mubr.f32.mxu0 0.0
        %490 = vmatmul.mubr.f32.gmra.mrb[0].mxu0 %v405
        %v491 = vpop.f32.mrb[0].mxu0
        %v492 = vadd.f32 %v392, %v491
        %v493 = vpop.f32.mrb[0].mxu0
        %v494 = vadd.f32 %v392, %v493
        %495 = vdwg.mxu0
        %v496 = vmax.f32 %v474, 0.0
        %v497 = vmax.f32 %v476, 0.0
        %v498 = vmax.f32 %v480, 0.0
        %v499 = vmax.f32 %v482, 0.0
        %v500 = vmax.f32 %v486, 0.0
        %v501 = vmax.f32 %v488, 0.0
        %v502 = vmax.f32 %v492, 0.0
        %v503 = vmax.f32 %v494, 0.0
        %v504 = vld [vmem:[%s6] sm:$0xff]
        %v505 = vld [vmem:[%s6 + $0x8] sm:$0xff]
        %v506 = vld [vmem:[%s6 + $0x10] sm:$0xff]
        %v507 = vld [vmem:[%s6 + $0x18] sm:$0xff]
        %509 = vset.pattern.permute.xlu0 0
        %510 = vperm.xlu0 %509, %v504
        %v511 = vpop.permute.xlu0 %510
        %514 = vset.pattern.permute.xlu0 0
        %515 = vperm.xlu0 %514, %v505
        %v516 = vpop.permute.xlu0 %515
        %519 = vset.pattern.permute.xlu0 0
        %520 = vperm.xlu0 %519, %v506
        %v521 = vpop.permute.xlu0 %520
        %524 = vset.pattern.permute.xlu0 0
        %525 = vperm.xlu0 %524, %v507
        %v526 = vpop.permute.xlu0 %525
        %v528 = vmul.f32 %v496, %v511
        %v529 = vmul.f32 %v497, %v511
        %v530 = vmul.f32 %v498, %v516
        %v531 = vmul.f32 %v499, %v516
        %v532 = vmul.f32 %v500, %v521
        %v533 = vmul.f32 %v501, %v521
        %v534 = vmul.f32 %v502, %v526
        %v535 = vmul.f32 %v503, %v526
        %v536 = vadd.f32 %v528, %v530
        %v537 = vadd.f32 %v536, %v532
        %v538 = vadd.f32 %v537, %v534
        %v539 = vrot.slane %v538, 4
        %v540 = vadd.f32 %v538, %v539
        %v541 = vrot.slane %v540, 2
        %v542 = vadd.f32 %v540, %v541
        %v543 = vrot.slane %v542, 1
        %v544 = vadd.f32 %v542, %v543
        %v545 = vadd.f32 %v529, %v531
        %v546 = vadd.f32 %v545, %v533
        %v547 = vadd.f32 %v546, %v535
        %v548 = vrot.slane %v547, 4
        %v549 = vadd.f32 %v547, %v548
        %v550 = vrot.slane %v549, 2
        %v551 = vadd.f32 %v549, %v550
        %v552 = vrot.slane %v551, 1
        %v553 = vadd.f32 %v551, %v552
        %s554 = sld [smem:[#allocation5]]
        %v555 = vstv %s554
        %v556 = vadd.f32 %v544, %v555
        %v557 = vadd.f32 %v553, %v555
        %v558 = vxor.u32 %v556, 2147483648
        %v559 = vxor.u32 %v557, 2147483648
        %v560 = vmul.f32 %v558, 1.442695
        %v561 = vpow.pop %v560
        %v562 = vmul.f32 %v559, 1.442695
        %v563 = vpow.pop %v562
        %v564 = vadd.f32 %v561, 1.0
        %v565 = vadd.f32 %v563, 1.0
        %v566 = vrcp.pop %v564
        %v567 = vmul.f32 1.0, %v566
        %v568 = vrcp.pop %v565
        %v569 = vmul.f32 1.0, %v568
        %v572 = vcombine.low %v567, %v569
        %v574 = vunpack.c.l.s4 1966171168
        %v575 = vunpack.c.0.s8 %v574
        %v576 = vlaneseq
        %v577 = vshrl.u32 %v576, 7
        %v578 = vsub.s32 %v575, %v577
        %v579 = vrot.slane %v572, %v578
        %v581 = vunpack.c.l.s4 1966171168
        %v582 = vunpack.c.0.s8 %v581
        %v583 = vlaneseq
        %v584 = vshrl.u32 %v583, 7
        %v585 = vsub.s32 %v582, %v584
        %v586 = vrot.slane %v579, %v585
        %v588 = vlaneseq
        %vm589 = vcmp.ge.s32.totalorder %v588, 0
        %vm590 = vcmp.lt.s32.totalorder %v588, 256
        %vm591 = vmand %vm589, %vm590
        %592 = vst.msk [vmem:[%s320] sm:$0x3] %vm591, %v586
        %v593 = vadd.f32 %v342, %v350
        %v594 = vadd.f32 %v343, %v351
        %v595 = vadd.f32 %v344, %v352
        %v596 = vadd.f32 %v345, %v353
        %v597 = vadd.f32 %v346, %v354
        %v598 = vadd.f32 %v347, %v355
        %v599 = vadd.f32 %v348, %v356
        %v600 = vadd.f32 %v349, %v357
        %v601 = vmul.f32 %v593, %v567
        %v602 = vmul.f32 %v594, %v569
        %v603 = vmul.f32 %v595, %v567
        %v604 = vmul.f32 %v596, %v569
        %v605 = vmul.f32 %v597, %v567
        %v606 = vmul.f32 %v598, %v569
        %v607 = vmul.f32 %v599, %v567
        %v608 = vmul.f32 %v600, %v569
        %v609 = vld [vmem:[%s327] sm:$0x3]
        %s610 = sld [smem:[#allocation3 + %s39]]
        %s611 = sld [smem:[#allocation4 + %s39]]
        %v612 = vlaneseq
        %v613 = vshrl.u32 %v612, 7
        %v614 = vadd.s32 %v613, 8
        %v615 = vadd.s32 %v613, 16
        %v616 = vadd.s32 %v613, 24
        %v617 = vadd.s32 %v613, 32
        %v618 = vadd.s32 %v613, 40
        %v619 = vadd.s32 %v613, 48
        %v620 = vadd.s32 %v613, 56
        %v621 = vadd.s32 %v613, 64
        %v622 = vadd.s32 %v613, 72
        %v623 = vadd.s32 %v613, 80
        %v624 = vadd.s32 %v613, 88
        %v625 = vadd.s32 %v613, 96
        %v626 = vadd.s32 %v613, 104
        %v627 = vadd.s32 %v613, 112
        %v628 = vadd.s32 %v613, 120
        %p629 = scmp.le.s32.totalorder %s610, 0
        %p630 = scmp.ge.s32.totalorder %s611, 0
        %p631 = pnand %p629, %p630
        %p632 = pneg %p631
        // Predicated region
        $region53: #{tpu_custom_call.1} parent=43 // pred_check
          _
        $region54: #{tpu_custom_call.1} parent=43 // pred_check_branch
          %634 = sbr.rel (%p631) target = $region56
        $region55: #{tpu_custom_call.1} parent=43 // pred_region
          %v635 = vlaneseq
          %v636 = vshrl.u32 %v635, 7
          %v637 = vsub.s32 0, %v636
          %v638 = vrot.slane %v609, %v637
          %v639 = vlaneseq
          %v640 = vshrl.u32 %v639, 7
          %v641 = vsub.s32 1, %v640
          %v642 = vrot.slane %v609, %v641
          %vm643 = vcmp.eq.s32.totalorder %v613, %v638
          %vm644 = vcmp.eq.s32.totalorder %v613, %v642
          %vm645 = vcmp.eq.s32.totalorder %v614, %v638
          %vm646 = vcmp.eq.s32.totalorder %v614, %v642
          %vm647 = vcmp.eq.s32.totalorder %v615, %v638
          %vm648 = vcmp.eq.s32.totalorder %v615, %v642
          %vm649 = vcmp.eq.s32.totalorder %v616, %v638
          %vm650 = vcmp.eq.s32.totalorder %v616, %v642
          %vm651 = vcmp.eq.s32.totalorder %v617, %v638
          %vm652 = vcmp.eq.s32.totalorder %v617, %v642
          %vm653 = vcmp.eq.s32.totalorder %v618, %v638
          %vm654 = vcmp.eq.s32.totalorder %v618, %v642
          %vm655 = vcmp.eq.s32.totalorder %v619, %v638
          %vm656 = vcmp.eq.s32.totalorder %v619, %v642
          %vm657 = vcmp.eq.s32.totalorder %v620, %v638
          %vm658 = vcmp.eq.s32.totalorder %v620, %v642
          %vm659 = vcmp.eq.s32.totalorder %v621, %v638
          %vm660 = vcmp.eq.s32.totalorder %v621, %v642
          %vm661 = vcmp.eq.s32.totalorder %v622, %v638
          %vm662 = vcmp.eq.s32.totalorder %v622, %v642
          %vm663 = vcmp.eq.s32.totalorder %v623, %v638
          %vm664 = vcmp.eq.s32.totalorder %v623, %v642
          %vm665 = vcmp.eq.s32.totalorder %v624, %v638
          %vm666 = vcmp.eq.s32.totalorder %v624, %v642
          %vm667 = vcmp.eq.s32.totalorder %v625, %v638
          %vm668 = vcmp.eq.s32.totalorder %v625, %v642
          %vm669 = vcmp.eq.s32.totalorder %v626, %v638
          %vm670 = vcmp.eq.s32.totalorder %v626, %v642
          %vm671 = vcmp.eq.s32.totalorder %v627, %v638
          %vm672 = vcmp.eq.s32.totalorder %v627, %v642
          %vm673 = vcmp.eq.s32.totalorder %v628, %v638
          %vm674 = vcmp.eq.s32.totalorder %v628, %v642
          %v675 = vsel %vm643, 1.0, 0.0
          %v676 = vsel %vm644, 1.0, 0.0
          %v677 = vsel %vm645, 1.0, 0.0
          %v678 = vsel %vm646, 1.0, 0.0
          %v679 = vsel %vm647, 1.0, 0.0
          %v680 = vsel %vm648, 1.0, 0.0
          %v681 = vsel %vm649, 1.0, 0.0
          %v682 = vsel %vm650, 1.0, 0.0
          %v683 = vsel %vm651, 1.0, 0.0
          %v684 = vsel %vm652, 1.0, 0.0
          %v685 = vsel %vm653, 1.0, 0.0
          %v686 = vsel %vm654, 1.0, 0.0
          %v687 = vsel %vm655, 1.0, 0.0
          %v688 = vsel %vm656, 1.0, 0.0
          %v689 = vsel %vm657, 1.0, 0.0
          %v690 = vsel %vm658, 1.0, 0.0
          %v691 = vsel %vm659, 1.0, 0.0
          %v692 = vsel %vm660, 1.0, 0.0
          %v693 = vsel %vm661, 1.0, 0.0
          %v694 = vsel %vm662, 1.0, 0.0
          %v695 = vsel %vm663, 1.0, 0.0
          %v696 = vsel %vm664, 1.0, 0.0
          %v697 = vsel %vm665, 1.0, 0.0
          %v698 = vsel %vm666, 1.0, 0.0
          %v699 = vsel %vm667, 1.0, 0.0
          %v700 = vsel %vm668, 1.0, 0.0
          %v701 = vsel %vm669, 1.0, 0.0
          %v702 = vsel %vm670, 1.0, 0.0
          %v703 = vsel %vm671, 1.0, 0.0
          %v704 = vsel %vm672, 1.0, 0.0
          %v705 = vsel %vm673, 1.0, 0.0
          %v706 = vsel %vm674, 1.0, 0.0
          %v707 = vld [vmem:[#allocation10] sm:$0xff]
          %v708 = vld [vmem:[#allocation10 + $0x10] sm:$0xff]
          %v709 = vld [vmem:[#allocation10 + $0x20] sm:$0xff]
          %v710 = vld [vmem:[#allocation10 + $0x30] sm:$0xff]
          %711 = vmatprep.subr.mxu0 %v676
          %712 = vmatpush1.xpose.msra.mxu0 %v675
          %713 = vmatprep.subr.mxu0 %v678
          %714 = vmatpush1.xpose.msra.mxu0 %v677
          %715 = vmatprep.subr.mxu0 %v680
          %716 = vmatpush1.xpose.msra.mxu0 %v679
          %717 = vmatprep.subr.mxu0 %v682
          %718 = vmatpush1.xpose.msra.mxu0 %v681
          %719 = vmatprep.subr.mxu0 %v684
          %720 = vmatpush1.xpose.msra.mxu0 %v683
          %721 = vmatprep.subr.mxu0 %v686
          %722 = vmatpush1.xpose.msra.mxu0 %v685
          %723 = vmatprep.subr.mxu0 %v688
          %724 = vmatpush1.xpose.msra.mxu0 %v687
          %725 = vmatprep.subr.mxu0 %v690
          %726 = vmatpush1.xpose.msra.mxu0 %v689
          %727 = vmatprep.subr.mxu0 %v692
          %728 = vmatpush1.xpose.msra.mxu0 %v691
          %729 = vmatprep.subr.mxu0 %v694
          %730 = vmatpush1.xpose.msra.mxu0 %v693
          %731 = vmatprep.subr.mxu0 %v696
          %732 = vmatpush1.xpose.msra.mxu0 %v695
          %733 = vmatprep.subr.mxu0 %v698
          %734 = vmatpush1.xpose.msra.mxu0 %v697
          %735 = vmatprep.subr.mxu0 %v700
          %736 = vmatpush1.xpose.msra.mxu0 %v699
          %737 = vmatprep.subr.mxu0 %v702
          %738 = vmatpush1.xpose.msra.mxu0 %v701
          %739 = vmatprep.subr.mxu0 %v704
          %740 = vmatpush1.xpose.msra.mxu0 %v703
          %741 = vmatprep.subr.mxu0 %v706
          %742 = vmatpush1.xpose.msra.mxu0 %v705
          %743 = vmatprep.subr.mxu0 0.0
          %744 = vmatpush1.xpose.msra.mxu0 0.0
          %745 = vmatprep.subr.mxu0 0.0
          %746 = vmatpush1.xpose.msra.mxu0 0.0
          %747 = vmatprep.subr.mxu0 0.0
          %748 = vmatpush1.xpose.msra.mxu0 0.0
          %749 = vmatprep.subr.mxu0 0.0
          %750 = vmatpush1.xpose.msra.mxu0 0.0
          %751 = vmatprep.subr.mxu0 0.0
          %752 = vmatpush1.xpose.msra.mxu0 0.0
          %753 = vmatprep.subr.mxu0 0.0
          %754 = vmatpush1.xpose.msra.mxu0 0.0
          %755 = vmatprep.subr.mxu0 0.0
          %756 = vmatpush1.xpose.msra.mxu0 0.0
          %757 = vmatprep.subr.mxu0 0.0
          %758 = vmatpush1.xpose.msra.mxu0 0.0
          %759 = vmatprep.subr.mxu0 0.0
          %760 = vmatpush1.xpose.msra.mxu0 0.0
          %761 = vmatprep.subr.mxu0 0.0
          %762 = vmatpush1.xpose.msra.mxu0 0.0
          %763 = vmatprep.subr.mxu0 0.0
          %764 = vmatpush1.xpose.msra.mxu0 0.0
          %765 = vmatprep.subr.mxu0 0.0
          %766 = vmatpush1.xpose.msra.mxu0 0.0
          %767 = vmatprep.subr.mxu0 0.0
          %768 = vmatpush1.xpose.msra.mxu0 0.0
          %769 = vmatprep.subr.mxu0 0.0
          %770 = vmatpush1.xpose.msra.mxu0 0.0
          %771 = vmatprep.subr.mxu0 0.0
          %772 = vmatpush1.xpose.msra.mxu0 0.0
          %773 = vmatprep.subr.mxu0 0.0
          %774 = vmatpush1.xpose.msra.mxu0 0.0
          %775 = vmatprep.mubr.f32.mxu0 %v602
          %776 = vmatmul.mubr.f32.gmra.mrb[0].mxu0 %v601
          %v777 = vpop.f32.mrb[0].mxu0
          %v778 = vadd.f32 0.0, %v777
          %v779 = vpop.f32.mrb[0].mxu0
          %780 = vmatprep.mubr.f32.mxu0 %v604
          %781 = vmatmul.mubr.f32.gmra.mrb[0].mxu0 %v603
          %v782 = vpop.f32.mrb[0].mxu0
          %v783 = vadd.f32 0.0, %v782
          %v784 = vpop.f32.mrb[0].mxu0
          %785 = vmatprep.mubr.f32.mxu0 %v606
          %786 = vmatmul.mubr.f32.gmra.mrb[0].mxu0 %v605
          %v787 = vpop.f32.mrb[0].mxu0
          %v788 = vadd.f32 0.0, %v787
          %v789 = vpop.f32.mrb[0].mxu0
          %790 = vmatprep.mubr.f32.mxu0 %v608
          %791 = vmatmul.mubr.f32.gmra.mrb[0].mxu0 %v607
          %v792 = vpop.f32.mrb[0].mxu0
          %v793 = vadd.f32 0.0, %v792
          %v794 = vpop.f32.mrb[0].mxu0
          %795 = vdwg.mxu0
          %v796 = vadd.f32 %v707, %v778
          %v797 = vadd.f32 %v708, %v783
          %v798 = vadd.f32 %v709, %v788
          %v799 = vadd.f32 %v710, %v793
          %800 = vst [vmem:[#allocation10] sm:$0xff] %v796
          %801 = vst [vmem:[#allocation10 + $0x10] sm:$0xff] %v797
          %802 = vst [vmem:[#allocation10 + $0x20] sm:$0xff] %v798
          %803 = vst [vmem:[#allocation10 + $0x30] sm:$0xff] %v799
        $region56: #{tpu_custom_call.1} parent=43 // pred_fallthru
          _
        %p804 = scmp.le.s32.totalorder %s610, 1
        %p805 = scmp.ge.s32.totalorder %s611, 1
        %p806 = pnand %p804, %p805
        %p807 = pneg %p806
        // Predicated region
        $region57: #{tpu_custom_call.1} parent=43 // pred_check
          _
        $region58: #{tpu_custom_call.1} parent=43 // pred_check_branch
          %809 = sbr.rel (%p806) target = $region60
        $region59: #{tpu_custom_call.1} parent=43 // pred_region
          %v810 = vsub.s32 %v609, 128
          %v811 = vlaneseq
          %v812 = vshrl.u32 %v811, 7
          %v813 = vsub.s32 0, %v812
          %v814 = vrot.slane %v810, %v813
          %v815 = vlaneseq
          %v816 = vshrl.u32 %v815, 7
          %v817 = vsub.s32 1, %v816
          %v818 = vrot.slane %v810, %v817
          %vm819 = vcmp.eq.s32.totalorder %v613, %v814
          %vm820 = vcmp.eq.s32.totalorder %v613, %v818
          %vm821 = vcmp.eq.s32.totalorder %v614, %v814
          %vm822 = vcmp.eq.s32.totalorder %v614, %v818
          %vm823 = vcmp.eq.s32.totalorder %v615, %v814
          %vm824 = vcmp.eq.s32.totalorder %v615, %v818
          %vm825 = vcmp.eq.s32.totalorder %v616, %v814
          %vm826 = vcmp.eq.s32.totalorder %v616, %v818
          %vm827 = vcmp.eq.s32.totalorder %v617, %v814
          %vm828 = vcmp.eq.s32.totalorder %v617, %v818
          %vm829 = vcmp.eq.s32.totalorder %v618, %v814
          %vm830 = vcmp.eq.s32.totalorder %v618, %v818
          %vm831 = vcmp.eq.s32.totalorder %v619, %v814
          %vm832 = vcmp.eq.s32.totalorder %v619, %v818
          %vm833 = vcmp.eq.s32.totalorder %v620, %v814
          %vm834 = vcmp.eq.s32.totalorder %v620, %v818
          %vm835 = vcmp.eq.s32.totalorder %v621, %v814
          %vm836 = vcmp.eq.s32.totalorder %v621, %v818
          %vm837 = vcmp.eq.s32.totalorder %v622, %v814
          %vm838 = vcmp.eq.s32.totalorder %v622, %v818
          %vm839 = vcmp.eq.s32.totalorder %v623, %v814
          %vm840 = vcmp.eq.s32.totalorder %v623, %v818
          %vm841 = vcmp.eq.s32.totalorder %v624, %v814
          %vm842 = vcmp.eq.s32.totalorder %v624, %v818
          %vm843 = vcmp.eq.s32.totalorder %v625, %v814
          %vm844 = vcmp.eq.s32.totalorder %v625, %v818
          %vm845 = vcmp.eq.s32.totalorder %v626, %v814
          %vm846 = vcmp.eq.s32.totalorder %v626, %v818
          %vm847 = vcmp.eq.s32.totalorder %v627, %v814
          %vm848 = vcmp.eq.s32.totalorder %v627, %v818
          %vm849 = vcmp.eq.s32.totalorder %v628, %v814
          %vm850 = vcmp.eq.s32.totalorder %v628, %v818
          %v851 = vsel %vm819, 1.0, 0.0
          %v852 = vsel %vm820, 1.0, 0.0
          %v853 = vsel %vm821, 1.0, 0.0
          %v854 = vsel %vm822, 1.0, 0.0
          %v855 = vsel %vm823, 1.0, 0.0
          %v856 = vsel %vm824, 1.0, 0.0
          %v857 = vsel %vm825, 1.0, 0.0
          %v858 = vsel %vm826, 1.0, 0.0
          %v859 = vsel %vm827, 1.0, 0.0
          %v860 = vsel %vm828, 1.0, 0.0
          %v861 = vsel %vm829, 1.0, 0.0
          %v862 = vsel %vm830, 1.0, 0.0
          %v863 = vsel %vm831, 1.0, 0.0
          %v864 = vsel %vm832, 1.0, 0.0
          %v865 = vsel %vm833, 1.0, 0.0
          %v866 = vsel %vm834, 1.0, 0.0
          %v867 = vsel %vm835, 1.0, 0.0
          %v868 = vsel %vm836, 1.0, 0.0
          %v869 = vsel %vm837, 1.0, 0.0
          %v870 = vsel %vm838, 1.0, 0.0
          %v871 = vsel %vm839, 1.0, 0.0
          %v872 = vsel %vm840, 1.0, 0.0
          %v873 = vsel %vm841, 1.0, 0.0
          %v874 = vsel %vm842, 1.0, 0.0
          %v875 = vsel %vm843, 1.0, 0.0
          %v876 = vsel %vm844, 1.0, 0.0
          %v877 = vsel %vm845, 1.0, 0.0
          %v878 = vsel %vm846, 1.0, 0.0
          %v879 = vsel %vm847, 1.0, 0.0
          %v880 = vsel %vm848, 1.0, 0.0
          %v881 = vsel %vm849, 1.0, 0.0
          %v882 = vsel %vm850, 1.0, 0.0
          %v883 = vld [vmem:[#allocation10 + $0x8] sm:$0xff]
          %v884 = vld [vmem:[#allocation10 + $0x18] sm:$0xff]
          %v885 = vld [vmem:[#allocation10 + $0x28] sm:$0xff]
          %v886 = vld [vmem:[#allocation10 + $0x38] sm:$0xff]
          %887 = vmatprep.subr.mxu0 %v852
          %888 = vmatpush1.xpose.msra.mxu0 %v851
          %889 = vmatprep.subr.mxu0 %v854
          %890 = vmatpush1.xpose.msra.mxu0 %v853
          %891 = vmatprep.subr.mxu0 %v856
          %892 = vmatpush1.xpose.msra.mxu0 %v855
          %893 = vmatprep.subr.mxu0 %v858
          %894 = vmatpush1.xpose.msra.mxu0 %v857
          %895 = vmatprep.subr.mxu0 %v860
          %896 = vmatpush1.xpose.msra.mxu0 %v859
          %897 = vmatprep.subr.mxu0 %v862
          %898 = vmatpush1.xpose.msra.mxu0 %v861
          %899 = vmatprep.subr.mxu0 %v864
          %900 = vmatpush1.xpose.msra.mxu0 %v863
          %901 = vmatprep.subr.mxu0 %v866
          %902 = vmatpush1.xpose.msra.mxu0 %v865
          %903 = vmatprep.subr.mxu0 %v868
          %904 = vmatpush1.xpose.msra.mxu0 %v867
          %905 = vmatprep.subr.mxu0 %v870
          %906 = vmatpush1.xpose.msra.mxu0 %v869
          %907 = vmatprep.subr.mxu0 %v872
          %908 = vmatpush1.xpose.msra.mxu0 %v871
          %909 = vmatprep.subr.mxu0 %v874
          %910 = vmatpush1.xpose.msra.mxu0 %v873
          %911 = vmatprep.subr.mxu0 %v876
          %912 = vmatpush1.xpose.msra.mxu0 %v875
          %913 = vmatprep.subr.mxu0 %v878
          %914 = vmatpush1.xpose.msra.mxu0 %v877
          %915 = vmatprep.subr.mxu0 %v880
          %916 = vmatpush1.xpose.msra.mxu0 %v879
          %917 = vmatprep.subr.mxu0 %v882
          %918 = vmatpush1.xpose.msra.mxu0 %v881
          %919 = vmatprep.subr.mxu0 0.0
          %920 = vmatpush1.xpose.msra.mxu0 0.0
          %921 = vmatprep.subr.mxu0 0.0
          %922 = vmatpush1.xpose.msra.mxu0 0.0
          %923 = vmatprep.subr.mxu0 0.0
          %924 = vmatpush1.xpose.msra.mxu0 0.0
          %925 = vmatprep.subr.mxu0 0.0
          %926 = vmatpush1.xpose.msra.mxu0 0.0
          %927 = vmatprep.subr.mxu0 0.0
          %928 = vmatpush1.xpose.msra.mxu0 0.0
          %929 = vmatprep.subr.mxu0 0.0
          %930 = vmatpush1.xpose.msra.mxu0 0.0
          %931 = vmatprep.subr.mxu0 0.0
          %932 = vmatpush1.xpose.msra.mxu0 0.0
          %933 = vmatprep.subr.mxu0 0.0
          %934 = vmatpush1.xpose.msra.mxu0 0.0
          %935 = vmatprep.subr.mxu0 0.0
          %936 = vmatpush1.xpose.msra.mxu0 0.0
          %937 = vmatprep.subr.mxu0 0.0
          %938 = vmatpush1.xpose.msra.mxu0 0.0
          %939 = vmatprep.subr.mxu0 0.0
          %940 = vmatpush1.xpose.msra.mxu0 0.0
          %941 = vmatprep.subr.mxu0 0.0
          %942 = vmatpush1.xpose.msra.mxu0 0.0
          %943 = vmatprep.subr.mxu0 0.0
          %944 = vmatpush1.xpose.msra.mxu0 0.0
          %945 = vmatprep.subr.mxu0 0.0
          %946 = vmatpush1.xpose.msra.mxu0 0.0
          %947 = vmatprep.subr.mxu0 0.0
          %948 = vmatpush1.xpose.msra.mxu0 0.0
          %949 = vmatprep.subr.mxu0 0.0
          %950 = vmatpush1.xpose.msra.mxu0 0.0
          %951 = vmatprep.mubr.f32.mxu0 %v602
          %952 = vmatmul.mubr.f32.gmra.mrb[0].mxu0 %v601
          %v953 = vpop.f32.mrb[0].mxu0
          %v954 = vadd.f32 0.0, %v953
          %v955 = vpop.f32.mrb[0].mxu0
          %956 = vmatprep.mubr.f32.mxu0 %v604
          %957 = vmatmul.mubr.f32.gmra.mrb[0].mxu0 %v603
          %v958 = vpop.f32.mrb[0].mxu0
          %v959 = vadd.f32 0.0, %v958
          %v960 = vpop.f32.mrb[0].mxu0
          %961 = vmatprep.mubr.f32.mxu0 %v606
          %962 = vmatmul.mubr.f32.gmra.mrb[0].mxu0 %v605
          %v963 = vpop.f32.mrb[0].mxu0
          %v964 = vadd.f32 0.0, %v963
          %v965 = vpop.f32.mrb[0].mxu0
          %966 = vmatprep.mubr.f32.mxu0 %v608
          %967 = vmatmul.mubr.f32.gmra.mrb[0].mxu0 %v607
          %v968 = vpop.f32.mrb[0].mxu0
          %v969 = vadd.f32 0.0, %v968
          %v970 = vpop.f32.mrb[0].mxu0
          %971 = vdwg.mxu0
          %v972 = vadd.f32 %v883, %v954
          %v973 = vadd.f32 %v884, %v959
          %v974 = vadd.f32 %v885, %v964
          %v975 = vadd.f32 %v886, %v969
          %976 = vst [vmem:[#allocation10 + $0x8] sm:$0xff] %v972
          %977 = vst [vmem:[#allocation10 + $0x18] sm:$0xff] %v973
          %978 = vst [vmem:[#allocation10 + $0x28] sm:$0xff] %v974
          %979 = vst [vmem:[#allocation10 + $0x38] sm:$0xff] %v975
        $region60: #{tpu_custom_call.1} parent=43 // pred_fallthru
          _
        %s980 = sand.u32 %s183, 1
        %s981 = scalar_lea.sflag [#allocation8], %s980
        %s982 = sand.u32 %s183, 1
        %s983 = smul.addr %s982, 2
        %s984 = scalar_lea.vmem [#allocation9], %s983
        // Predicated region
        $region61: #{tpu_custom_call.1} parent=43 // pred_check
          %p985 = pneg %p193
        $region62: #{tpu_custom_call.1} parent=43 // pred_check_branch
          %987 = sbr.rel (%p985) target = $region64
        $region63: #{tpu_custom_call.1} parent=43 // pred_region
          %s988 = smul.u32 2, %s39
          %s990 = ssub.s32 32, 32
          %991 = vsyncadd %s981, %s990
          %s992 = smul.addr %s988, 16
          %s993 = scalar_lea.hbm %s8, %s992
          %s995 = sshll.u32 %s984, 4
          %s996 = int_to_ptr.vmem [resolvable:$true] %s995
          %998 = dma.vmem_to_hbm [thread:$0]  %s996, 32, %s993, %s981
        $region64: #{tpu_custom_call.1} parent=43 // pred_fallthru
          _
        // Predicated region
        $region65: #{tpu_custom_call.1} parent=43 // pred_check
          %p999 = pneg %p214
        $region66: #{tpu_custom_call.1} parent=43 // pred_check_branch
          %1001 = sbr.rel (%p999) target = $region68
        $region67: #{tpu_custom_call.1} parent=43 // pred_region
          %s1003 = ssub.s32 1024, 1024
          %1004 = vsyncadd [#allocation11], %s1003
          %s1005 = sshll.u32 [#allocation10], 4
          %s1006 = int_to_ptr.vmem [resolvable:$true] %s1005
          %1011 = dma.vmem_to_hbm [thread:$0]  %s1006, 1024, %s9, [#allocation11], 256, 256, 16
        $region68: #{tpu_custom_call.1} parent=43 // pred_fallthru
          _
        // Predicated region
        $region69: #{tpu_custom_call.1} parent=43 // pred_check
          %p1012 = pneg %p214
        $region70: #{tpu_custom_call.1} parent=43 // pred_check_branch
          %1014 = sbr.rel (%p1012) target = $region72
        $region71: #{tpu_custom_call.1} parent=43 // pred_region
          %1015 = dma.done [#allocation11], 1024
        $region72: #{tpu_custom_call.1} parent=43 // pred_fallthru
          _
      $region44: #{tpu_custom_call.1} parent=5 // pred_fallthru
        _
      %p1016 = scmp.le.s32.totalorder 2, %s34
      // Predicated region
      $region73: #{tpu_custom_call.1} parent=5 // pred_check
        %p1017 = pneg %p1016
      $region74: #{tpu_custom_call.1} parent=5 // pred_check_branch
        %1019 = sbr.rel (%p1017) target = $region76
      $region75: #{tpu_custom_call.1} parent=5 // pred_region
        %s1020 = ssub.s32 %s34, 2
        // Predicated region
        $region77: #{tpu_custom_call.1} parent=75 // pred_check
          %p1021 = pneg %p199
        $region78: #{tpu_custom_call.1} parent=75 // pred_check_branch
          %1023 = sbr.rel (%p1021) target = $region80
        $region79: #{tpu_custom_call.1} parent=75 // pred_region
          %s1024 = sand.u32 %s184, 1
          %s1025 = scalar_lea.sflag [#allocation8], %s1024
          %s1026 = sand.u32 %s184, 1
          %s1027 = smul.addr %s1026, 2
          %s1028 = scalar_lea.vmem [#allocation9], %s1027
          %1029 = dma.done %s1025, 32
        $region80: #{tpu_custom_call.1} parent=75 // pred_fallthru
          _
      $region76: #{tpu_custom_call.1} parent=5 // pred_fallthru
        _
    $region6: #{tpu_custom_call.1} parent=1 // loop_footer
      %s38 = sadd.s32 1, %s34
    $region7: #{tpu_custom_call.1} parent=1 // loop_footer_branch
      %33 = sbr.rel target = $region3
    $region8: #{tpu_custom_call.1} parent=1 // loop_exit
      _
    %1030 = vsyncpa [#allocation7], 1
    %s1031 = scalar_lea.sflag [#allocation7], 1
    %1032 = vsyncpa %s1031, 1
    %1033 = vsyncpa [#allocation8], 1
    %s1034 = scalar_lea.sflag [#allocation8], 1
    %1035 = vsyncpa %s1034, 1
    %1036 = vsyncpa [#allocation11], 1

</llo_original>
